<compile_context>
chip_gen: v7x
topology: tpu7x:2x2x1
jax: 0.10.0
libtpu: 0.0.40
codegen_flags: <defaults>
</compile_context>

<pallas_src>
import jax
import jax.numpy as jnp
from jax.experimental import pallas as pl

# ----------------------------- model config ---------------------------------
B = 2            # batch
L = 128          # waveform length
K = 8            # conv kernel size == stride  (non-overlapping frames)
STRIDE = K
T = (L - K) // STRIDE + 1          # number of frames = 16
H = 32           # ssl_out_dim (hidden width)
HP = 128         # lane-padded hidden width (full 128-lane vregs)
NUM_LAYERS = 3   # stacked dense layers in the synthetic SSL backbone
M = B * T        # total rows = 32 (single block, no grid)


# ------------------------------ Pallas kernel --------------------------------
def ssl_forward_kernel(patch_ref, w_ref, b_ref, out_ref):
    """Fused conv-as-matmul + stacked dense layers, one block, no grid.

    patch_ref : (M, HP)                 zero-padded waveform patches
    w_ref     : (NUM_LAYERS+1, HP, HP)  stacked weights (conv + dense), zero-padded
    b_ref     : (NUM_LAYERS+1, 1, HP)   stacked biases, zero-padded
    out_ref   : (M, HP)                 last-layer features (valid in lanes [:H])
    """
    # Conv1d(1, H, K, stride=K) == patches @ W + b   (MXU matmul).
    x = jnp.dot(patch_ref[...], w_ref[0],
                preferred_element_type=jnp.float32) + b_ref[0]
    x = jax.nn.gelu(x)

    # Stacked dense layers; GELU on all but the last (final hidden state).
    # NOTE: jax.nn.gelu uses the tanh approximation; PyTorch nn.GELU defaults
    # to the exact erf form (~1e-3 difference).  The in-file reference uses
    # the same approximation, so the comparison below is exact.
    for layer in range(1, NUM_LAYERS + 1):
        x = jnp.dot(x, w_ref[layer],
                    preferred_element_type=jnp.float32) + b_ref[layer]
        if layer < NUM_LAYERS:
            x = jax.nn.gelu(x)

    out_ref[...] = x.astype(out_ref.dtype)


# ------------------------------ wrapper ---------------------------------------
def _pack_params(params):
    """One-time wrapper-side packing into lane-dense (128-wide) stacked tensors."""
    conv_w, conv_b, layer_w, layer_b = params
    w_stack = jnp.zeros((NUM_LAYERS + 1, HP, HP), jnp.float32)
    w_stack = w_stack.at[0, :K, :H].set(conv_w)            # conv weight in slot 0
    w_stack = w_stack.at[1:, :H, :H].set(layer_w)          # dense weights
    b_stack = jnp.zeros((NUM_LAYERS + 1, 1, HP), jnp.float32)
    b_stack = b_stack.at[0, 0, :H].set(conv_b)
    b_stack = b_stack.at[1:, 0, :H].set(layer_b)
    return w_stack, b_stack


def ssl_model_forward(wav, wav_length, params):
    """JAX wrapper reproducing SSL_Model.forward.

    wav        : (B, 1, L) float32
    wav_length : (B,) int32     (frame-length bookkeeping; SSL_Model discards it)
    returns    : (B, T, H) float32  == ssl_features[-1]
    """
    w_stack, b_stack = _pack_params(params)

    # wav.squeeze(1)
    wav = jnp.squeeze(wav, axis=1)                          # (B, L)

    # im2col for kernel==stride conv: pure reshape; pad K -> 128 lanes so the
    # first matmul input is lane-dense (extra lanes are zero, matching the
    # zero-padded rows K..127 of the conv weight).
    patches = wav.reshape(B * T, K)                         # (M, K)
    patches = jnp.pad(patches, ((0, 0), (0, HP - K)))       # (M, HP)

    # Whole problem as a single VMEM block: no grid, no pipelining machinery.
    out = pl.pallas_call(
        ssl_forward_kernel,
        out_shape=jax.ShapeDtypeStruct((M, HP), jnp.float32),
    )(patches, w_stack, b_stack)

    # ssl_lens (frame counts) — computed but discarded by SSL_Model.forward.
    # TODO(synk): wav_length is not used to mask padded frames (matches the
    # original module, which also ignores ssl_lens).
    _ssl_lens = (wav_length - K) // STRIDE + 1

    return out[:, :H].reshape(B, T, H)


# ------------------------------ reference ------------------------------------
def ssl_model_forward_ref(wav, params):
    conv_w, conv_b, layer_w, layer_b = params
    x = jnp.squeeze(wav, axis=1).reshape(B, T, K)
    x = jnp.einsum("btk,kh->bth", x, conv_w) + conv_b
    x = jax.nn.gelu(x)
    for layer in range(NUM_LAYERS):
        x = jnp.einsum("bth,hd->btd", x, layer_w[layer]) + layer_b[layer]
        if layer < NUM_LAYERS - 1:
            x = jax.nn.gelu(x)
    return x


# ------------------------------- main -----------------------------------------
if __name__ == "__main__":
    key = jax.random.PRNGKey(0)
    k_wav, k_cw, k_cb, k_lw, k_lb = jax.random.split(key, 5)

    wav = jax.random.normal(k_wav, (B, 1, L), dtype=jnp.float32)
    wav_length = jnp.full((B,), L, dtype=jnp.int32)

    # Deterministic synthetic parameters for the SSL backbone.
    conv_w = jax.random.normal(k_cw, (K, H), dtype=jnp.float32) * 0.1
    conv_b = jax.random.normal(k_cb, (H,), dtype=jnp.float32) * 0.01
    layer_w = jax.random.normal(k_lw, (NUM_LAYERS, H, H), dtype=jnp.float32) * 0.1
    layer_b = jax.random.normal(k_lb, (NUM_LAYERS, H), dtype=jnp.float32) * 0.01
    params = (conv_w, conv_b, layer_w, layer_b)

    feats = ssl_model_forward(wav, wav_length, params)
    feats = jax.block_until_ready(feats)

    ref = ssl_model_forward_ref(wav, params)
    assert feats.shape == (B, T, H), feats.shape
    assert jnp.allclose(feats, ref, atol=1e-4, rtol=1e-4), "mismatch vs JAX reference"

    print("KERNEL_OK")
</pallas_src>

<mosaic_0001>
module attributes {stable_mosaic.version = 11 : i64} {
  func.func @ssl_forward_kernel(%arg0: memref<32x128xf32, #tpu.memory_space<vmem>>, %arg1: memref<4x128x128xf32, #tpu.memory_space<vmem>>, %arg2: memref<4x1x128xf32, #tpu.memory_space<vmem>>, %arg3: memref<32x128xf32, #tpu.memory_space<vmem>>) attributes {dimension_semantics = [], scalar_prefetch = 0 : i64, scratch_operands = 0 : i64, tpu.core_type = #tpu.core_type<tc>} {
    %c0 = arith.constant 0 : index
    %c0_0 = arith.constant 0 : index
    %0 = vector.load %arg0[%c0, %c0_0] : memref<32x128xf32, #tpu.memory_space<vmem>>, vector<32x128xf32>
    %c0_1 = arith.constant 0 : index
    %c0_2 = arith.constant 0 : index
    %c0_3 = arith.constant 0 : index
    %1 = vector.load %arg1[%c0_1, %c0_2, %c0_3] : memref<4x128x128xf32, #tpu.memory_space<vmem>>, vector<1x128x128xf32>
    %2 = vector.shape_cast %1 : vector<1x128x128xf32> to vector<128x128xf32>
    %cst = arith.constant dense<0.000000e+00> : vector<32x128xf32>
    %3 = tpu.matmul %0, %2, %cst {dimension_numbers = #tpu.dot_dimension_numbers<[1], [0], [0], [1], [0, 0, 1, 1], [], []>} : vector<32x128xf32>, vector<128x128xf32>, vector<32x128xf32> -> vector<32x128xf32>
    %c0_4 = arith.constant 0 : index
    %c0_5 = arith.constant 0 : index
    %c0_6 = arith.constant 0 : index
    %4 = vector.load %arg2[%c0_4, %c0_5, %c0_6] : memref<4x1x128xf32, #tpu.memory_space<vmem>>, vector<1x1x128xf32>
    %5 = vector.shape_cast %4 : vector<1x1x128xf32> to vector<1x128xf32>
    %6 = vector.broadcast %5 : vector<1x128xf32> to vector<32x128xf32>
    %7 = arith.addf %3, %6 : vector<32x128xf32>
    %8 = arith.mulf %7, %7 : vector<32x128xf32>
    %9 = arith.mulf %7, %8 : vector<32x128xf32>
    %cst_7 = arith.constant 4.471500e-02 : f32
    %10 = vector.broadcast %cst_7 : f32 to vector<32x128xf32>
    %11 = arith.mulf %10, %9 : vector<32x128xf32>
    %12 = arith.addf %7, %11 : vector<32x128xf32>
    %cst_8 = arith.constant 0.797884583 : f32
    %13 = vector.broadcast %cst_8 : f32 to vector<32x128xf32>
    %14 = arith.mulf %13, %12 : vector<32x128xf32>
    %15 = math.tanh %14 : vector<32x128xf32>
    %cst_9 = arith.constant 1.000000e+00 : f32
    %16 = vector.broadcast %cst_9 : f32 to vector<32x128xf32>
    %17 = arith.addf %16, %15 : vector<32x128xf32>
    %cst_10 = arith.constant 5.000000e-01 : f32
    %18 = vector.broadcast %cst_10 : f32 to vector<32x128xf32>
    %19 = arith.mulf %18, %17 : vector<32x128xf32>
    %20 = arith.mulf %7, %19 : vector<32x128xf32>
    %c1 = arith.constant 1 : index
    %c0_11 = arith.constant 0 : index
    %c0_12 = arith.constant 0 : index
    %21 = vector.load %arg1[%c1, %c0_11, %c0_12] : memref<4x128x128xf32, #tpu.memory_space<vmem>>, vector<1x128x128xf32>
    %22 = vector.shape_cast %21 : vector<1x128x128xf32> to vector<128x128xf32>
    %cst_13 = arith.constant dense<0.000000e+00> : vector<32x128xf32>
    %23 = tpu.matmul %20, %22, %cst_13 {dimension_numbers = #tpu.dot_dimension_numbers<[1], [0], [0], [1], [0, 0, 1, 1], [], []>} : vector<32x128xf32>, vector<128x128xf32>, vector<32x128xf32> -> vector<32x128xf32>
    %c1_14 = arith.constant 1 : index
    %c0_15 = arith.constant 0 : index
    %c0_16 = arith.constant 0 : index
    %24 = vector.load %arg2[%c1_14, %c0_15, %c0_16] : memref<4x1x128xf32, #tpu.memory_space<vmem>>, vector<1x1x128xf32>
    %25 = vector.shape_cast %24 : vector<1x1x128xf32> to vector<1x128xf32>
    %26 = vector.broadcast %25 : vector<1x128xf32> to vector<32x128xf32>
    %27 = arith.addf %23, %26 : vector<32x128xf32>
    %28 = arith.mulf %27, %27 : vector<32x128xf32>
    %29 = arith.mulf %27, %28 : vector<32x128xf32>
    %cst_17 = arith.constant 4.471500e-02 : f32
    %30 = vector.broadcast %cst_17 : f32 to vector<32x128xf32>
    %31 = arith.mulf %30, %29 : vector<32x128xf32>
    %32 = arith.addf %27, %31 : vector<32x128xf32>
    %cst_18 = arith.constant 0.797884583 : f32
    %33 = vector.broadcast %cst_18 : f32 to vector<32x128xf32>
    %34 = arith.mulf %33, %32 : vector<32x128xf32>
    %35 = math.tanh %34 : vector<32x128xf32>
    %cst_19 = arith.constant 1.000000e+00 : f32
    %36 = vector.broadcast %cst_19 : f32 to vector<32x128xf32>
    %37 = arith.addf %36, %35 : vector<32x128xf32>
    %cst_20 = arith.constant 5.000000e-01 : f32
    %38 = vector.broadcast %cst_20 : f32 to vector<32x128xf32>
    %39 = arith.mulf %38, %37 : vector<32x128xf32>
    %40 = arith.mulf %27, %39 : vector<32x128xf32>
    %c2 = arith.constant 2 : index
    %c0_21 = arith.constant 0 : index
    %c0_22 = arith.constant 0 : index
    %41 = vector.load %arg1[%c2, %c0_21, %c0_22] : memref<4x128x128xf32, #tpu.memory_space<vmem>>, vector<1x128x128xf32>
    %42 = vector.shape_cast %41 : vector<1x128x128xf32> to vector<128x128xf32>
    %cst_23 = arith.constant dense<0.000000e+00> : vector<32x128xf32>
    %43 = tpu.matmul %40, %42, %cst_23 {dimension_numbers = #tpu.dot_dimension_numbers<[1], [0], [0], [1], [0, 0, 1, 1], [], []>} : vector<32x128xf32>, vector<128x128xf32>, vector<32x128xf32> -> vector<32x128xf32>
    %c2_24 = arith.constant 2 : index
    %c0_25 = arith.constant 0 : index
    %c0_26 = arith.constant 0 : index
    %44 = vector.load %arg2[%c2_24, %c0_25, %c0_26] : memref<4x1x128xf32, #tpu.memory_space<vmem>>, vector<1x1x128xf32>
    %45 = vector.shape_cast %44 : vector<1x1x128xf32> to vector<1x128xf32>
    %46 = vector.broadcast %45 : vector<1x128xf32> to vector<32x128xf32>
    %47 = arith.addf %43, %46 : vector<32x128xf32>
    %48 = arith.mulf %47, %47 : vector<32x128xf32>
    %49 = arith.mulf %47, %48 : vector<32x128xf32>
    %cst_27 = arith.constant 4.471500e-02 : f32
    %50 = vector.broadcast %cst_27 : f32 to vector<32x128xf32>
    %51 = arith.mulf %50, %49 : vector<32x128xf32>
    %52 = arith.addf %47, %51 : vector<32x128xf32>
    %cst_28 = arith.constant 0.797884583 : f32
    %53 = vector.broadcast %cst_28 : f32 to vector<32x128xf32>
    %54 = arith.mulf %53, %52 : vector<32x128xf32>
    %55 = math.tanh %54 : vector<32x128xf32>
    %cst_29 = arith.constant 1.000000e+00 : f32
    %56 = vector.broadcast %cst_29 : f32 to vector<32x128xf32>
    %57 = arith.addf %56, %55 : vector<32x128xf32>
    %cst_30 = arith.constant 5.000000e-01 : f32
    %58 = vector.broadcast %cst_30 : f32 to vector<32x128xf32>
    %59 = arith.mulf %58, %57 : vector<32x128xf32>
    %60 = arith.mulf %47, %59 : vector<32x128xf32>
    %c3 = arith.constant 3 : index
    %c0_31 = arith.constant 0 : index
    %c0_32 = arith.constant 0 : index
    %61 = vector.load %arg1[%c3, %c0_31, %c0_32] : memref<4x128x128xf32, #tpu.memory_space<vmem>>, vector<1x128x128xf32>
    %62 = vector.shape_cast %61 : vector<1x128x128xf32> to vector<128x128xf32>
    %cst_33 = arith.constant dense<0.000000e+00> : vector<32x128xf32>
    %63 = tpu.matmul %60, %62, %cst_33 {dimension_numbers = #tpu.dot_dimension_numbers<[1], [0], [0], [1], [0, 0, 1, 1], [], []>} : vector<32x128xf32>, vector<128x128xf32>, vector<32x128xf32> -> vector<32x128xf32>
    %c3_34 = arith.constant 3 : index
    %c0_35 = arith.constant 0 : index
    %c0_36 = arith.constant 0 : index
    %64 = vector.load %arg2[%c3_34, %c0_35, %c0_36] : memref<4x1x128xf32, #tpu.memory_space<vmem>>, vector<1x1x128xf32>
    %65 = vector.shape_cast %64 : vector<1x1x128xf32> to vector<1x128xf32>
    %66 = vector.broadcast %65 : vector<1x128xf32> to vector<32x128xf32>
    %67 = arith.addf %63, %66 : vector<32x128xf32>
    %c0_37 = arith.constant 0 : index
    %c0_38 = arith.constant 0 : index
    %68 = vector.load %arg3[%c0_37, %c0_38] : memref<32x128xf32, #tpu.memory_space<vmem>>, vector<32x128xf32>
    tpu.vector_store %arg3[%c0_37, %c0_38], %67 {strides = array<i32>} : memref<32x128xf32, #tpu.memory_space<vmem>>, vector<32x128xf32>,
    return
  }
}

</mosaic_0001>

<llo_original>
// kernel: tpu_custom_call.1
$region0: #{tpu_custom_call.1}
  #allocation0 [shape = 'u32[]', space=smem, size = 0x4, offset = 0x4, fixed_abs, tag = 'smem constant byte address 0x4 - core index']
  #allocation1 [shape = 'u32[144,128]{1,0:T(1,128)}', space=vmem, size = 0x12000, scoped, tag = 'internal scratch']
  %s0 = inlined_call_operand.hbm [shape: f32[32,128], index: 0, kind: input, shape index: {}]
  %s1 = inlined_call_operand.hbm [shape: f32[4,128,128], index: 1, kind: input, shape index: {}]
  %s2 = inlined_call_operand.vmem [shape: f32[4,1,128], index: 2, kind: input, shape index: {}]
  %s3 = inlined_call_operand.hbm [shape: f32[32,128], index: 3, kind: output, shape index: {}]
  %s4 = sld [smem:[#allocation0]]
  $region30: #{tpu_custom_call.1} parent=0
    _
  %s6 = ssub.s32 1, %s4
  %s7 = scalar_select 0, %s6, %s4
  $region1: #{tpu_custom_call.1} parent=0
    #allocation2 [shape = 'u8[16384]{0}', space=vmem, size = 0x4000, scoped, tag = 'input window, operand 0, single buffered']
    #allocation3 [shape = 's32[1]{0}', space=sflag, size = 0x4, scoped, tag = 'scoped memory for tpu_custom_call.1']
    #allocation4 [shape = 's32[1]{0}', space=sflag, size = 0x4, scoped, tag = 'scoped memory for tpu_custom_call.1']
    #allocation5 [shape = 'u8[262144]{0}', space=vmem, size = 0x40000, scoped, tag = 'input window, operand 1, single buffered']
    #allocation6 [shape = 's32[1]{0}', space=sflag, size = 0x4, scoped, tag = 'scoped memory for tpu_custom_call.1']
    #allocation7 [shape = 'u8[16384]{0}', space=vmem, size = 0x4000, scoped, tag = 'output window, operand 0, single buffered']
    %8 = vsyncpa [#allocation3], 0
    %9 = vsyncpa [#allocation6], 0
    %10 = vsyncpa [#allocation4], 0
    // Predicated region
    $region2: #{tpu_custom_call.1} parent=1 // pred_check
      _
    $region3: #{tpu_custom_call.1} parent=1 // pred_check_branch
      %12 = sbr.rel (0) target = $region5
    $region4: #{tpu_custom_call.1} parent=1 // pred_region
      %s14 = ssub.s32 512, 512
      %15 = vsyncadd [#allocation3], %s14
      %s16 = sshll.u32 [#allocation2], 4
      %s17 = int_to_ptr.vmem [resolvable:$true] %s16
      %22 = dma.hbm_to_vmem [thread:$0]  %s0, 512, %s17, [#allocation3], 128, 128, 8
    $region5: #{tpu_custom_call.1} parent=1 // pred_fallthru
      _
    // Predicated region
    $region6: #{tpu_custom_call.1} parent=1 // pred_check
      _
    $region7: #{tpu_custom_call.1} parent=1 // pred_check_branch
      %24 = sbr.rel (0) target = $region9
    $region8: #{tpu_custom_call.1} parent=1 // pred_region
      %s26 = ssub.s32 8192, 8192
      %27 = vsyncadd [#allocation6], %s26
      %s28 = sshll.u32 [#allocation5], 4
      %s29 = int_to_ptr.vmem [resolvable:$true] %s28
      %34 = dma.hbm_to_vmem [thread:$0]  %s1, 8192, %s29, [#allocation6], 128, 128, 8
    $region9: #{tpu_custom_call.1} parent=1 // pred_fallthru
      _
    // Predicated region
    $region10: #{tpu_custom_call.1} parent=1 // pred_check
      _
    $region11: #{tpu_custom_call.1} parent=1 // pred_check_branch
      %36 = sbr.rel (0) target = $region13
    $region12: #{tpu_custom_call.1} parent=1 // pred_region
      _
    $region13: #{tpu_custom_call.1} parent=1 // pred_fallthru
      _
    // Predicated region
    $region14: #{tpu_custom_call.1} parent=1 // pred_check
      _
    $region15: #{tpu_custom_call.1} parent=1 // pred_check_branch
      %38 = sbr.rel (0) target = $region17
    $region16: #{tpu_custom_call.1} parent=1 // pred_region
      %39 = dma.done [#allocation3], 512
    $region17: #{tpu_custom_call.1} parent=1 // pred_fallthru
      _
    // Predicated region
    $region18: #{tpu_custom_call.1} parent=1 // pred_check
      _
    $region19: #{tpu_custom_call.1} parent=1 // pred_check_branch
      %41 = sbr.rel (0) target = $region21
    $region20: #{tpu_custom_call.1} parent=1 // pred_region
      %42 = dma.done [#allocation6], 8192
    $region21: #{tpu_custom_call.1} parent=1 // pred_fallthru
      _
    %v43 = vld [vmem:[#allocation2] sm:$0xff]
    %v44 = vld [vmem:[#allocation2 + $0x8] sm:$0xff]
    %v45 = vld [vmem:[#allocation2 + $0x10] sm:$0xff]
    %v46 = vld [vmem:[#allocation2 + $0x18] sm:$0xff]
    %v47 = vld [vmem:[#allocation5] sm:$0xff]
    %v48 = vld [vmem:[#allocation5 + $0x8] sm:$0xff]
    %v49 = vld [vmem:[#allocation5 + $0x10] sm:$0xff]
    %v50 = vld [vmem:[#allocation5 + $0x18] sm:$0xff]
    %v51 = vld [vmem:[#allocation5 + $0x20] sm:$0xff]
    %v52 = vld [vmem:[#allocation5 + $0x28] sm:$0xff]
    %v53 = vld [vmem:[#allocation5 + $0x30] sm:$0xff]
    %v54 = vld [vmem:[#allocation5 + $0x38] sm:$0xff]
    %v55 = vld [vmem:[#allocation5 + $0x40] sm:$0xff]
    %v56 = vld [vmem:[#allocation5 + $0x48] sm:$0xff]
    %v57 = vld [vmem:[#allocation5 + $0x50] sm:$0xff]
    %v58 = vld [vmem:[#allocation5 + $0x58] sm:$0xff]
    %v59 = vld [vmem:[#allocation5 + $0x60] sm:$0xff]
    %v60 = vld [vmem:[#allocation5 + $0x68] sm:$0xff]
    %v61 = vld [vmem:[#allocation5 + $0x70] sm:$0xff]
    %v62 = vld [vmem:[#allocation5 + $0x78] sm:$0xff]
    %v63 = vld [vmem:[%s2] sm:$0x1]
    %v65 = vlaneseq
    %v66 = vshrl.u32 %v65, 7
    %v67 = vsub.s32 0, %v66
    %v68 = vrot.slane %v63, %v67
    %70 = vmatprep.subr.mxu0 0.0
    %71 = vmatpush1.msra.mxu0 %v47
    %72 = vmatprep.subr.mxu0 0.0
    %73 = vmatpush1.msra.mxu0 %v48
    %74 = vmatprep.subr.mxu0 0.0
    %75 = vmatpush1.msra.mxu0 %v49
    %76 = vmatprep.subr.mxu0 0.0
    %77 = vmatpush1.msra.mxu0 %v50
    %78 = vmatprep.subr.mxu0 0.0
    %79 = vmatpush1.msra.mxu0 %v51
    %80 = vmatprep.subr.mxu0 0.0
    %81 = vmatpush1.msra.mxu0 %v52
    %82 = vmatprep.subr.mxu0 0.0
    %83 = vmatpush1.msra.mxu0 %v53
    %84 = vmatprep.subr.mxu0 0.0
    %85 = vmatpush1.msra.mxu0 %v54
    %86 = vmatprep.subr.mxu0 0.0
    %87 = vmatpush1.msra.mxu0 %v55
    %88 = vmatprep.subr.mxu0 0.0
    %89 = vmatpush1.msra.mxu0 %v56
    %90 = vmatprep.subr.mxu0 0.0
    %91 = vmatpush1.msra.mxu0 %v57
    %92 = vmatprep.subr.mxu0 0.0
    %93 = vmatpush1.msra.mxu0 %v58
    %94 = vmatprep.subr.mxu0 0.0
    %95 = vmatpush1.msra.mxu0 %v59
    %96 = vmatprep.subr.mxu0 0.0
    %97 = vmatpush1.msra.mxu0 %v60
    %98 = vmatprep.subr.mxu0 0.0
    %99 = vmatpush1.msra.mxu0 %v61
    %100 = vmatprep.subr.mxu0 0.0
    %101 = vmatpush1.msra.mxu0 %v62
    %102 = vmatprep.subr.mxu0 0.0
    %103 = vmatpush1.msra.mxu0 0.0
    %104 = vmatprep.subr.mxu0 0.0
    %105 = vmatpush1.msra.mxu0 0.0
    %106 = vmatprep.subr.mxu0 0.0
    %107 = vmatpush1.msra.mxu0 0.0
    %108 = vmatprep.subr.mxu0 0.0
    %109 = vmatpush1.msra.mxu0 0.0
    %110 = vmatprep.subr.mxu0 0.0
    %111 = vmatpush1.msra.mxu0 0.0
    %112 = vmatprep.subr.mxu0 0.0
    %113 = vmatpush1.msra.mxu0 0.0
    %114 = vmatprep.subr.mxu0 0.0
    %115 = vmatpush1.msra.mxu0 0.0
    %116 = vmatprep.subr.mxu0 0.0
    %117 = vmatpush1.msra.mxu0 0.0
    %118 = vmatprep.subr.mxu0 0.0
    %119 = vmatpush1.msra.mxu0 0.0
    %120 = vmatprep.subr.mxu0 0.0
    %121 = vmatpush1.msra.mxu0 0.0
    %122 = vmatprep.subr.mxu0 0.0
    %123 = vmatpush1.msra.mxu0 0.0
    %124 = vmatprep.subr.mxu0 0.0
    %125 = vmatpush1.msra.mxu0 0.0
    %126 = vmatprep.subr.mxu0 0.0
    %127 = vmatpush1.msra.mxu0 0.0
    %128 = vmatprep.subr.mxu0 0.0
    %129 = vmatpush1.msra.mxu0 0.0
    %130 = vmatprep.subr.mxu0 0.0
    %131 = vmatpush1.msra.mxu0 0.0
    %132 = vmatprep.subr.mxu0 0.0
    %133 = vmatpush1.msra.mxu0 0.0
    %134 = vmatprep.mubr.f32.mxu0 0.0
    %135 = vmatmul.mubr.f32.gmra.mrb[0].mxu0 %v43
    %v136 = vpop.f32.mrb[0].mxu0
    %v137 = vadd.f32 %v68, %v136
    %v138 = vpop.f32.mrb[0].mxu0
    %139 = vmatprep.mubr.f32.mxu0 0.0
    %140 = vmatmul.mubr.f32.gmra.mrb[0].mxu0 %v44
    %v141 = vpop.f32.mrb[0].mxu0
    %v142 = vadd.f32 %v68, %v141
    %v143 = vpop.f32.mrb[0].mxu0
    %144 = vmatprep.mubr.f32.mxu0 0.0
    %145 = vmatmul.mubr.f32.gmra.mrb[0].mxu0 %v45
    %v146 = vpop.f32.mrb[0].mxu0
    %v147 = vadd.f32 %v68, %v146
    %v148 = vpop.f32.mrb[0].mxu0
    %149 = vmatprep.mubr.f32.mxu0 0.0
    %150 = vmatmul.mubr.f32.gmra.mrb[0].mxu0 %v46
    %v151 = vpop.f32.mrb[0].mxu0
    %v152 = vadd.f32 %v68, %v151
    %v153 = vpop.f32.mrb[0].mxu0
    %154 = vdwg.mxu0
    %v155 = vmul.f32 %v137, %v137
    %v156 = vmul.f32 %v142, %v142
    %v157 = vmul.f32 %v147, %v147
    %v158 = vmul.f32 %v152, %v152
    %v159 = vmul.f32 %v137, %v155
    %v160 = vmul.f32 %v142, %v156
    %v161 = vmul.f32 %v147, %v157
    %v162 = vmul.f32 %v152, %v158
    %v163 = vmul.f32 %v159, 0.044715
    %v164 = vmul.f32 %v160, 0.044715
    %v165 = vmul.f32 %v161, 0.044715
    %v166 = vmul.f32 %v162, 0.044715
    %v167 = vadd.f32 %v137, %v163
    %v168 = vadd.f32 %v142, %v164
    %v169 = vadd.f32 %v147, %v165
    %v170 = vadd.f32 %v152, %v166
    %v171 = vmul.f32 %v167, 0.7978846
    %v172 = vmul.f32 %v168, 0.7978846
    %v173 = vmul.f32 %v169, 0.7978846
    %v174 = vmul.f32 %v170, 0.7978846
    %v175 = vtanh.pop %v171
    %v176 = vtanh.pop %v172
    %v177 = vtanh.pop %v173
    %v178 = vtanh.pop %v174
    %v179 = vadd.f32 %v175, 1.0
    %v180 = vadd.f32 %v176, 1.0
    %v181 = vadd.f32 %v177, 1.0
    %v182 = vadd.f32 %v178, 1.0
    %v183 = vmul.f32 %v179, 0.5
    %v184 = vmul.f32 %v180, 0.5
    %v185 = vmul.f32 %v181, 0.5
    %v186 = vmul.f32 %v182, 0.5
    %v187 = vmul.f32 %v137, %v183
    %v188 = vmul.f32 %v142, %v184
    %v189 = vmul.f32 %v147, %v185
    %v190 = vmul.f32 %v152, %v186
    %s191 = scalar_lea.vmem [#allocation5], 128
    %v192 = vld [vmem:[%s191] sm:$0xff]
    %v193 = vld [vmem:[%s191 + $0x8] sm:$0xff]
    %v194 = vld [vmem:[%s191 + $0x10] sm:$0xff]
    %v195 = vld [vmem:[%s191 + $0x18] sm:$0xff]
    %v196 = vld [vmem:[%s191 + $0x20] sm:$0xff]
    %v197 = vld [vmem:[%s191 + $0x28] sm:$0xff]
    %v198 = vld [vmem:[%s191 + $0x30] sm:$0xff]
    %v199 = vld [vmem:[%s191 + $0x38] sm:$0xff]
    %v200 = vld [vmem:[%s191 + $0x40] sm:$0xff]
    %v201 = vld [vmem:[%s191 + $0x48] sm:$0xff]
    %v202 = vld [vmem:[%s191 + $0x50] sm:$0xff]
    %v203 = vld [vmem:[%s191 + $0x58] sm:$0xff]
    %v204 = vld [vmem:[%s191 + $0x60] sm:$0xff]
    %v205 = vld [vmem:[%s191 + $0x68] sm:$0xff]
    %v206 = vld [vmem:[%s191 + $0x70] sm:$0xff]
    %v207 = vld [vmem:[%s191 + $0x78] sm:$0xff]
    %s208 = scalar_lea.vmem %s2, 1
    %v209 = vld [vmem:[%s208] sm:$0x1]
    %v211 = vlaneseq
    %v212 = vshrl.u32 %v211, 7
    %v213 = vsub.s32 0, %v212
    %v214 = vrot.slane %v209, %v213
    %216 = vmatprep.subr.mxu0 0.0
    %217 = vmatpush1.msra.mxu0 %v192
    %218 = vmatprep.subr.mxu0 0.0
    %219 = vmatpush1.msra.mxu0 %v193
    %220 = vmatprep.subr.mxu0 0.0
    %221 = vmatpush1.msra.mxu0 %v194
    %222 = vmatprep.subr.mxu0 0.0
    %223 = vmatpush1.msra.mxu0 %v195
    %224 = vmatprep.subr.mxu0 0.0
    %225 = vmatpush1.msra.mxu0 %v196
    %226 = vmatprep.subr.mxu0 0.0
    %227 = vmatpush1.msra.mxu0 %v197
    %228 = vmatprep.subr.mxu0 0.0
    %229 = vmatpush1.msra.mxu0 %v198
    %230 = vmatprep.subr.mxu0 0.0
    %231 = vmatpush1.msra.mxu0 %v199
    %232 = vmatprep.subr.mxu0 0.0
    %233 = vmatpush1.msra.mxu0 %v200
    %234 = vmatprep.subr.mxu0 0.0
    %235 = vmatpush1.msra.mxu0 %v201
    %236 = vmatprep.subr.mxu0 0.0
    %237 = vmatpush1.msra.mxu0 %v202
    %238 = vmatprep.subr.mxu0 0.0
    %239 = vmatpush1.msra.mxu0 %v203
    %240 = vmatprep.subr.mxu0 0.0
    %241 = vmatpush1.msra.mxu0 %v204
    %242 = vmatprep.subr.mxu0 0.0
    %243 = vmatpush1.msra.mxu0 %v205
    %244 = vmatprep.subr.mxu0 0.0
    %245 = vmatpush1.msra.mxu0 %v206
    %246 = vmatprep.subr.mxu0 0.0
    %247 = vmatpush1.msra.mxu0 %v207
    %248 = vmatprep.subr.mxu0 0.0
    %249 = vmatpush1.msra.mxu0 0.0
    %250 = vmatprep.subr.mxu0 0.0
    %251 = vmatpush1.msra.mxu0 0.0
    %252 = vmatprep.subr.mxu0 0.0
    %253 = vmatpush1.msra.mxu0 0.0
    %254 = vmatprep.subr.mxu0 0.0
    %255 = vmatpush1.msra.mxu0 0.0
    %256 = vmatprep.subr.mxu0 0.0
    %257 = vmatpush1.msra.mxu0 0.0
    %258 = vmatprep.subr.mxu0 0.0
    %259 = vmatpush1.msra.mxu0 0.0
    %260 = vmatprep.subr.mxu0 0.0
    %261 = vmatpush1.msra.mxu0 0.0
    %262 = vmatprep.subr.mxu0 0.0
    %263 = vmatpush1.msra.mxu0 0.0
    %264 = vmatprep.subr.mxu0 0.0
    %265 = vmatpush1.msra.mxu0 0.0
    %266 = vmatprep.subr.mxu0 0.0
    %267 = vmatpush1.msra.mxu0 0.0
    %268 = vmatprep.subr.mxu0 0.0
    %269 = vmatpush1.msra.mxu0 0.0
    %270 = vmatprep.subr.mxu0 0.0
    %271 = vmatpush1.msra.mxu0 0.0
    %272 = vmatprep.subr.mxu0 0.0
    %273 = vmatpush1.msra.mxu0 0.0
    %274 = vmatprep.subr.mxu0 0.0
    %275 = vmatpush1.msra.mxu0 0.0
    %276 = vmatprep.subr.mxu0 0.0
    %277 = vmatpush1.msra.mxu0 0.0
    %278 = vmatprep.subr.mxu0 0.0
    %279 = vmatpush1.msra.mxu0 0.0
    %280 = vmatprep.mubr.f32.mxu0 0.0
    %281 = vmatmul.mubr.f32.gmra.mrb[0].mxu0 %v187
    %v282 = vpop.f32.mrb[0].mxu0
    %v283 = vadd.f32 %v214, %v282
    %v284 = vpop.f32.mrb[0].mxu0
    %285 = vmatprep.mubr.f32.mxu0 0.0
    %286 = vmatmul.mubr.f32.gmra.mrb[0].mxu0 %v188
    %v287 = vpop.f32.mrb[0].mxu0
    %v288 = vadd.f32 %v214, %v287
    %v289 = vpop.f32.mrb[0].mxu0
    %290 = vmatprep.mubr.f32.mxu0 0.0
    %291 = vmatmul.mubr.f32.gmra.mrb[0].mxu0 %v189
    %v292 = vpop.f32.mrb[0].mxu0
    %v293 = vadd.f32 %v214, %v292
    %v294 = vpop.f32.mrb[0].mxu0
    %295 = vmatprep.mubr.f32.mxu0 0.0
    %296 = vmatmul.mubr.f32.gmra.mrb[0].mxu0 %v190
    %v297 = vpop.f32.mrb[0].mxu0
    %v298 = vadd.f32 %v214, %v297
    %v299 = vpop.f32.mrb[0].mxu0
    %300 = vdwg.mxu0
    %v301 = vmul.f32 %v283, %v283
    %v302 = vmul.f32 %v288, %v288
    %v303 = vmul.f32 %v293, %v293
    %v304 = vmul.f32 %v298, %v298
    %v305 = vmul.f32 %v283, %v301
    %v306 = vmul.f32 %v288, %v302
    %v307 = vmul.f32 %v293, %v303
    %v308 = vmul.f32 %v298, %v304
    %v309 = vmul.f32 %v305, 0.044715
    %v310 = vmul.f32 %v306, 0.044715
    %v311 = vmul.f32 %v307, 0.044715
    %v312 = vmul.f32 %v308, 0.044715
    %v313 = vadd.f32 %v283, %v309
    %v314 = vadd.f32 %v288, %v310
    %v315 = vadd.f32 %v293, %v311
    %v316 = vadd.f32 %v298, %v312
    %v317 = vmul.f32 %v313, 0.7978846
    %v318 = vmul.f32 %v314, 0.7978846
    %v319 = vmul.f32 %v315, 0.7978846
    %v320 = vmul.f32 %v316, 0.7978846
    %v321 = vtanh.pop %v317
    %v322 = vtanh.pop %v318
    %v323 = vtanh.pop %v319
    %v324 = vtanh.pop %v320
    %v325 = vadd.f32 %v321, 1.0
    %v326 = vadd.f32 %v322, 1.0
    %v327 = vadd.f32 %v323, 1.0
    %v328 = vadd.f32 %v324, 1.0
    %v329 = vmul.f32 %v325, 0.5
    %v330 = vmul.f32 %v326, 0.5
    %v331 = vmul.f32 %v327, 0.5
    %v332 = vmul.f32 %v328, 0.5
    %v333 = vmul.f32 %v283, %v329
    %v334 = vmul.f32 %v288, %v330
    %v335 = vmul.f32 %v293, %v331
    %v336 = vmul.f32 %v298, %v332
    %s337 = scalar_lea.vmem [#allocation5], 256
    %v338 = vld [vmem:[%s337] sm:$0xff]
    %v339 = vld [vmem:[%s337 + $0x8] sm:$0xff]
    %v340 = vld [vmem:[%s337 + $0x10] sm:$0xff]
    %v341 = vld [vmem:[%s337 + $0x18] sm:$0xff]
    %v342 = vld [vmem:[%s337 + $0x20] sm:$0xff]
    %v343 = vld [vmem:[%s337 + $0x28] sm:$0xff]
    %v344 = vld [vmem:[%s337 + $0x30] sm:$0xff]
    %v345 = vld [vmem:[%s337 + $0x38] sm:$0xff]
    %v346 = vld [vmem:[%s337 + $0x40] sm:$0xff]
    %v347 = vld [vmem:[%s337 + $0x48] sm:$0xff]
    %v348 = vld [vmem:[%s337 + $0x50] sm:$0xff]
    %v349 = vld [vmem:[%s337 + $0x58] sm:$0xff]
    %v350 = vld [vmem:[%s337 + $0x60] sm:$0xff]
    %v351 = vld [vmem:[%s337 + $0x68] sm:$0xff]
    %v352 = vld [vmem:[%s337 + $0x70] sm:$0xff]
    %v353 = vld [vmem:[%s337 + $0x78] sm:$0xff]
    %s354 = scalar_lea.vmem %s2, 2
    %v355 = vld [vmem:[%s354] sm:$0x1]
    %v357 = vlaneseq
    %v358 = vshrl.u32 %v357, 7
    %v359 = vsub.s32 0, %v358
    %v360 = vrot.slane %v355, %v359
    %362 = vmatprep.subr.mxu0 0.0
    %363 = vmatpush1.msra.mxu0 %v338
    %364 = vmatprep.subr.mxu0 0.0
    %365 = vmatpush1.msra.mxu0 %v339
    %366 = vmatprep.subr.mxu0 0.0
    %367 = vmatpush1.msra.mxu0 %v340
    %368 = vmatprep.subr.mxu0 0.0
    %369 = vmatpush1.msra.mxu0 %v341
    %370 = vmatprep.subr.mxu0 0.0
    %371 = vmatpush1.msra.mxu0 %v342
    %372 = vmatprep.subr.mxu0 0.0
    %373 = vmatpush1.msra.mxu0 %v343
    %374 = vmatprep.subr.mxu0 0.0
    %375 = vmatpush1.msra.mxu0 %v344
    %376 = vmatprep.subr.mxu0 0.0
    %377 = vmatpush1.msra.mxu0 %v345
    %378 = vmatprep.subr.mxu0 0.0
    %379 = vmatpush1.msra.mxu0 %v346
    %380 = vmatprep.subr.mxu0 0.0
    %381 = vmatpush1.msra.mxu0 %v347
    %382 = vmatprep.subr.mxu0 0.0
    %383 = vmatpush1.msra.mxu0 %v348
    %384 = vmatprep.subr.mxu0 0.0
    %385 = vmatpush1.msra.mxu0 %v349
    %386 = vmatprep.subr.mxu0 0.0
    %387 = vmatpush1.msra.mxu0 %v350
    %388 = vmatprep.subr.mxu0 0.0
    %389 = vmatpush1.msra.mxu0 %v351
    %390 = vmatprep.subr.mxu0 0.0
    %391 = vmatpush1.msra.mxu0 %v352
    %392 = vmatprep.subr.mxu0 0.0
    %393 = vmatpush1.msra.mxu0 %v353
    %394 = vmatprep.subr.mxu0 0.0
    %395 = vmatpush1.msra.mxu0 0.0
    %396 = vmatprep.subr.mxu0 0.0
    %397 = vmatpush1.msra.mxu0 0.0
    %398 = vmatprep.subr.mxu0 0.0
    %399 = vmatpush1.msra.mxu0 0.0
    %400 = vmatprep.subr.mxu0 0.0
    %401 = vmatpush1.msra.mxu0 0.0
    %402 = vmatprep.subr.mxu0 0.0
    %403 = vmatpush1.msra.mxu0 0.0
    %404 = vmatprep.subr.mxu0 0.0
    %405 = vmatpush1.msra.mxu0 0.0
    %406 = vmatprep.subr.mxu0 0.0
    %407 = vmatpush1.msra.mxu0 0.0
    %408 = vmatprep.subr.mxu0 0.0
    %409 = vmatpush1.msra.mxu0 0.0
    %410 = vmatprep.subr.mxu0 0.0
    %411 = vmatpush1.msra.mxu0 0.0
    %412 = vmatprep.subr.mxu0 0.0
    %413 = vmatpush1.msra.mxu0 0.0
    %414 = vmatprep.subr.mxu0 0.0
    %415 = vmatpush1.msra.mxu0 0.0
    %416 = vmatprep.subr.mxu0 0.0
    %417 = vmatpush1.msra.mxu0 0.0
    %418 = vmatprep.subr.mxu0 0.0
    %419 = vmatpush1.msra.mxu0 0.0
    %420 = vmatprep.subr.mxu0 0.0
    %421 = vmatpush1.msra.mxu0 0.0
    %422 = vmatprep.subr.mxu0 0.0
    %423 = vmatpush1.msra.mxu0 0.0
    %424 = vmatprep.subr.mxu0 0.0
    %425 = vmatpush1.msra.mxu0 0.0
    %426 = vmatprep.mubr.f32.mxu0 0.0
    %427 = vmatmul.mubr.f32.gmra.mrb[0].mxu0 %v333
    %v428 = vpop.f32.mrb[0].mxu0
    %v429 = vadd.f32 %v360, %v428
    %v430 = vpop.f32.mrb[0].mxu0
    %431 = vmatprep.mubr.f32.mxu0 0.0
    %432 = vmatmul.mubr.f32.gmra.mrb[0].mxu0 %v334
    %v433 = vpop.f32.mrb[0].mxu0
    %v434 = vadd.f32 %v360, %v433
    %v435 = vpop.f32.mrb[0].mxu0
    %436 = vmatprep.mubr.f32.mxu0 0.0
    %437 = vmatmul.mubr.f32.gmra.mrb[0].mxu0 %v335
    %v438 = vpop.f32.mrb[0].mxu0
    %v439 = vadd.f32 %v360, %v438
    %v440 = vpop.f32.mrb[0].mxu0
    %441 = vmatprep.mubr.f32.mxu0 0.0
    %442 = vmatmul.mubr.f32.gmra.mrb[0].mxu0 %v336
    %v443 = vpop.f32.mrb[0].mxu0
    %v444 = vadd.f32 %v360, %v443
    %v445 = vpop.f32.mrb[0].mxu0
    %446 = vdwg.mxu0
    %v447 = vmul.f32 %v429, %v429
    %v448 = vmul.f32 %v434, %v434
    %v449 = vmul.f32 %v439, %v439
    %v450 = vmul.f32 %v444, %v444
    %v451 = vmul.f32 %v429, %v447
    %v452 = vmul.f32 %v434, %v448
    %v453 = vmul.f32 %v439, %v449
    %v454 = vmul.f32 %v444, %v450
    %v455 = vmul.f32 %v451, 0.044715
    %v456 = vmul.f32 %v452, 0.044715
    %v457 = vmul.f32 %v453, 0.044715
    %v458 = vmul.f32 %v454, 0.044715
    %v459 = vadd.f32 %v429, %v455
    %v460 = vadd.f32 %v434, %v456
    %v461 = vadd.f32 %v439, %v457
    %v462 = vadd.f32 %v444, %v458
    %v463 = vmul.f32 %v459, 0.7978846
    %v464 = vmul.f32 %v460, 0.7978846
    %v465 = vmul.f32 %v461, 0.7978846
    %v466 = vmul.f32 %v462, 0.7978846
    %v467 = vtanh.pop %v463
    %v468 = vtanh.pop %v464
    %v469 = vtanh.pop %v465
    %v470 = vtanh.pop %v466
    %v471 = vadd.f32 %v467, 1.0
    %v472 = vadd.f32 %v468, 1.0
    %v473 = vadd.f32 %v469, 1.0
    %v474 = vadd.f32 %v470, 1.0
    %v475 = vmul.f32 %v471, 0.5
    %v476 = vmul.f32 %v472, 0.5
    %v477 = vmul.f32 %v473, 0.5
    %v478 = vmul.f32 %v474, 0.5
    %v479 = vmul.f32 %v429, %v475
    %v480 = vmul.f32 %v434, %v476
    %v481 = vmul.f32 %v439, %v477
    %v482 = vmul.f32 %v444, %v478
    %s483 = scalar_lea.vmem [#allocation5], 384
    %v484 = vld [vmem:[%s483] sm:$0xff]
    %v485 = vld [vmem:[%s483 + $0x8] sm:$0xff]
    %v486 = vld [vmem:[%s483 + $0x10] sm:$0xff]
    %v487 = vld [vmem:[%s483 + $0x18] sm:$0xff]
    %v488 = vld [vmem:[%s483 + $0x20] sm:$0xff]
    %v489 = vld [vmem:[%s483 + $0x28] sm:$0xff]
    %v490 = vld [vmem:[%s483 + $0x30] sm:$0xff]
    %v491 = vld [vmem:[%s483 + $0x38] sm:$0xff]
    %v492 = vld [vmem:[%s483 + $0x40] sm:$0xff]
    %v493 = vld [vmem:[%s483 + $0x48] sm:$0xff]
    %v494 = vld [vmem:[%s483 + $0x50] sm:$0xff]
    %v495 = vld [vmem:[%s483 + $0x58] sm:$0xff]
    %v496 = vld [vmem:[%s483 + $0x60] sm:$0xff]
    %v497 = vld [vmem:[%s483 + $0x68] sm:$0xff]
    %v498 = vld [vmem:[%s483 + $0x70] sm:$0xff]
    %v499 = vld [vmem:[%s483 + $0x78] sm:$0xff]
    %s500 = scalar_lea.vmem %s2, 3
    %v501 = vld [vmem:[%s500] sm:$0x1]
    %v503 = vlaneseq
    %v504 = vshrl.u32 %v503, 7
    %v505 = vsub.s32 0, %v504
    %v506 = vrot.slane %v501, %v505
    %508 = vmatprep.subr.mxu0 0.0
    %509 = vmatpush1.msra.mxu0 %v484
    %510 = vmatprep.subr.mxu0 0.0
    %511 = vmatpush1.msra.mxu0 %v485
    %512 = vmatprep.subr.mxu0 0.0
    %513 = vmatpush1.msra.mxu0 %v486
    %514 = vmatprep.subr.mxu0 0.0
    %515 = vmatpush1.msra.mxu0 %v487
    %516 = vmatprep.subr.mxu0 0.0
    %517 = vmatpush1.msra.mxu0 %v488
    %518 = vmatprep.subr.mxu0 0.0
    %519 = vmatpush1.msra.mxu0 %v489
    %520 = vmatprep.subr.mxu0 0.0
    %521 = vmatpush1.msra.mxu0 %v490
    %522 = vmatprep.subr.mxu0 0.0
    %523 = vmatpush1.msra.mxu0 %v491
    %524 = vmatprep.subr.mxu0 0.0
    %525 = vmatpush1.msra.mxu0 %v492
    %526 = vmatprep.subr.mxu0 0.0
    %527 = vmatpush1.msra.mxu0 %v493
    %528 = vmatprep.subr.mxu0 0.0
    %529 = vmatpush1.msra.mxu0 %v494
    %530 = vmatprep.subr.mxu0 0.0
    %531 = vmatpush1.msra.mxu0 %v495
    %532 = vmatprep.subr.mxu0 0.0
    %533 = vmatpush1.msra.mxu0 %v496
    %534 = vmatprep.subr.mxu0 0.0
    %535 = vmatpush1.msra.mxu0 %v497
    %536 = vmatprep.subr.mxu0 0.0
    %537 = vmatpush1.msra.mxu0 %v498
    %538 = vmatprep.subr.mxu0 0.0
    %539 = vmatpush1.msra.mxu0 %v499
    %540 = vmatprep.subr.mxu0 0.0
    %541 = vmatpush1.msra.mxu0 0.0
    %542 = vmatprep.subr.mxu0 0.0
    %543 = vmatpush1.msra.mxu0 0.0
    %544 = vmatprep.subr.mxu0 0.0
    %545 = vmatpush1.msra.mxu0 0.0
    %546 = vmatprep.subr.mxu0 0.0
    %547 = vmatpush1.msra.mxu0 0.0
    %548 = vmatprep.subr.mxu0 0.0
    %549 = vmatpush1.msra.mxu0 0.0
    %550 = vmatprep.subr.mxu0 0.0
    %551 = vmatpush1.msra.mxu0 0.0
    %552 = vmatprep.subr.mxu0 0.0
    %553 = vmatpush1.msra.mxu0 0.0
    %554 = vmatprep.subr.mxu0 0.0
    %555 = vmatpush1.msra.mxu0 0.0
    %556 = vmatprep.subr.mxu0 0.0
    %557 = vmatpush1.msra.mxu0 0.0
    %558 = vmatprep.subr.mxu0 0.0
    %559 = vmatpush1.msra.mxu0 0.0
    %560 = vmatprep.subr.mxu0 0.0
    %561 = vmatpush1.msra.mxu0 0.0
    %562 = vmatprep.subr.mxu0 0.0
    %563 = vmatpush1.msra.mxu0 0.0
    %564 = vmatprep.subr.mxu0 0.0
    %565 = vmatpush1.msra.mxu0 0.0
    %566 = vmatprep.subr.mxu0 0.0
    %567 = vmatpush1.msra.mxu0 0.0
    %568 = vmatprep.subr.mxu0 0.0
    %569 = vmatpush1.msra.mxu0 0.0
    %570 = vmatprep.subr.mxu0 0.0
    %571 = vmatpush1.msra.mxu0 0.0
    %572 = vmatprep.mubr.f32.mxu0 0.0
    %573 = vmatmul.mubr.f32.gmra.mrb[0].mxu0 %v479
    %v574 = vpop.f32.mrb[0].mxu0
    %v575 = vadd.f32 %v506, %v574
    %v576 = vpop.f32.mrb[0].mxu0
    %577 = vmatprep.mubr.f32.mxu0 0.0
    %578 = vmatmul.mubr.f32.gmra.mrb[0].mxu0 %v480
    %v579 = vpop.f32.mrb[0].mxu0
    %v580 = vadd.f32 %v506, %v579
    %v581 = vpop.f32.mrb[0].mxu0
    %582 = vmatprep.mubr.f32.mxu0 0.0
    %583 = vmatmul.mubr.f32.gmra.mrb[0].mxu0 %v481
    %v584 = vpop.f32.mrb[0].mxu0
    %v585 = vadd.f32 %v506, %v584
    %v586 = vpop.f32.mrb[0].mxu0
    %587 = vmatprep.mubr.f32.mxu0 0.0
    %588 = vmatmul.mubr.f32.gmra.mrb[0].mxu0 %v482
    %v589 = vpop.f32.mrb[0].mxu0
    %v590 = vadd.f32 %v506, %v589
    %v591 = vpop.f32.mrb[0].mxu0
    %592 = vdwg.mxu0
    %593 = vst [vmem:[#allocation7] sm:$0xff] %v575
    %594 = vst [vmem:[#allocation7 + $0x8] sm:$0xff] %v580
    %595 = vst [vmem:[#allocation7 + $0x10] sm:$0xff] %v585
    %596 = vst [vmem:[#allocation7 + $0x18] sm:$0xff] %v590
    // Predicated region
    $region22: #{tpu_custom_call.1} parent=1 // pred_check
      _
    $region23: #{tpu_custom_call.1} parent=1 // pred_check_branch
      %598 = sbr.rel (0) target = $region25
    $region24: #{tpu_custom_call.1} parent=1 // pred_region
      %s600 = ssub.s32 512, 512
      %601 = vsyncadd [#allocation4], %s600
      %s602 = sshll.u32 [#allocation7], 4
      %s603 = int_to_ptr.vmem [resolvable:$true] %s602
      %608 = dma.vmem_to_hbm [thread:$0]  %s603, 512, %s3, [#allocation4], 128, 128, 8
    $region25: #{tpu_custom_call.1} parent=1 // pred_fallthru
      _
    // Predicated region
    $region26: #{tpu_custom_call.1} parent=1 // pred_check
      _
    $region27: #{tpu_custom_call.1} parent=1 // pred_check_branch
      %610 = sbr.rel (0) target = $region29
    $region28: #{tpu_custom_call.1} parent=1 // pred_region
      %611 = dma.done [#allocation4], 512
    $region29: #{tpu_custom_call.1} parent=1 // pred_fallthru
      _
    %612 = vsyncpa [#allocation3], 1
    %613 = vsyncpa [#allocation6], 1
    %614 = vsyncpa [#allocation4], 1

</llo_original>
